<compile_context>
chip_gen: v7x
topology: tpu7x:2x2x1
jax: 0.10.0
libtpu: 0.0.40
codegen_flags: <defaults>
</compile_context>

<pallas_src>
import jax
import jax.numpy as jnp
from jax.experimental import pallas as pl
from jax.experimental.pallas import tpu as pltpu

_INV_SQRT2 = 0.7071067811865476
_LN_EPS = 1e-5


def _epilogue_f32(projected, wf_ref, params_ref):
    """GELU -> second Linear -> residual -> LayerNorm, f32 math.

    `projected` is the f32 result of the first Linear (bias already added).
    params_ref rows: 0 = bp (consumed by caller), 1 = bf, 2 = gamma, 3 = beta.
    """
    bf = params_ref[1:2, :].astype(jnp.float32)
    gamma = params_ref[2:3, :].astype(jnp.float32)
    beta = params_ref[3:4, :].astype(jnp.float32)

    # Exact (erf-based) GELU, matching torch.nn.GELU() default numerics.
    # (jax.nn.gelu(..., approximate=True) would move the transcendental to the
    #  EUP but deviates from the torch default, so it is not used here.)
    h = 0.5 * projected * (1.0 + jax.lax.erf(projected * _INV_SQRT2))

    # Second Linear on the MXU; h cast to the weight dtype, f32 accumulation.
    z = jnp.dot(h.astype(wf_ref.dtype), wf_ref[...],
                preferred_element_type=jnp.float32) + bf

    # TODO(synk): Dropout is identity (eval mode); training-mode inverted
    # dropout would need pltpu.prng_seed + pltpu.prng_random_bits here.
    r = z + projected

    # Fused single-pass LayerNorm statistics (sum & sum-of-squares together),
    # variance clamped to avoid rsqrt of a tiny negative cancellation result.
    inv_p = 1.0 / jnp.float32(r.shape[-1])
    s1 = jnp.sum(r, axis=-1, keepdims=True)
    s2 = jnp.sum(r * r, axis=-1, keepdims=True)
    mean = s1 * inv_p
    var = jnp.maximum(s2 * inv_p - mean * mean, 0.0)
    inv = jax.lax.rsqrt(var + _LN_EPS)
    return (r - mean) * inv * gamma + beta


def projection_head_kernel(x_ref, wp_ref, wf_ref, params_ref, o_ref):
    """Weight-resident path: full E reduction in one MXU call per batch tile."""
    projected = jnp.dot(x_ref[...], wp_ref[...],
                        preferred_element_type=jnp.float32)
    projected = projected + params_ref[0:1, :].astype(jnp.float32)
    o_ref[...] = _epilogue_f32(projected, wf_ref,
                               params_ref).astype(o_ref.dtype)


def projection_head_ktiled_kernel(x_ref, wp_ref, wf_ref, params_ref, o_ref,
                                  acc_ref):
    """K-tiled fallback: the embedding (reduction) dim is a grid axis; the
    first matmul accumulates into an f32 VMEM scratch and the epilogue runs on
    the last K step. Used when Wp is too large to keep VMEM-resident."""
    k = pl.program_id(1)

    @pl.when(k == 0)
    def _init():
        acc_ref[...] = jnp.zeros_like(acc_ref)

    acc_ref[...] += jnp.dot(x_ref[...], wp_ref[...],
                            preferred_element_type=jnp.float32)

    @pl.when(k == pl.num_programs(1) - 1)
    def _finalize():
        projected = acc_ref[...] + params_ref[0:1, :].astype(jnp.float32)
        o_ref[...] = _epilogue_f32(projected, wf_ref,
                                   params_ref).astype(o_ref.dtype)


def projection_head(x, wp, bp, wf, bf, gamma, beta, *, block_m=512,
                    block_k=None, force_ktiled=False, vmem_limit_bytes=None):
    """x: [B, E]; wp: [E, P] (pre-transposed); wf: [P, P] (pre-transposed);
    bp / bf / gamma / beta: [P] or [1, P]."""
    B, E = x.shape
    P = wp.shape[1]

    # Pack the four per-feature parameter rows into one (4, P) array:
    # a single aligned fetch / resident buffer instead of four tiny ones.
    params = jnp.concatenate(
        [jnp.reshape(bp, (1, P)), jnp.reshape(bf, (1, P)),
         jnp.reshape(gamma, (1, P)), jnp.reshape(beta, (1, P))], axis=0)

    # Batch tile: full batch if it fits in one block, else a multiple of 8.
    # No jnp.pad: grid = cdiv(B, block_m); the partial last block computes on
    # don't-care rows and Pallas masks the out-of-bounds writes.
    if B <= block_m:
        block_m = B
    else:
        block_m = max(8, (block_m // 8) * 8)
    grid_m = pl.cdiv(B, block_m)

    x_b = x.dtype.itemsize
    wp_b = wp.dtype.itemsize
    wf_b = wf.dtype.itemsize
    p_b = params.dtype.itemsize
    o_b = x.dtype.itemsize

    weight_bytes = E * P * wp_b + P * P * wf_b
    # Weight-resident design is fine while Wp+Wf stay well under ~1/4 of the
    # smallest VMEM budget (v7x: 64 MiB physical); otherwise tile the E dim.
    use_ktiled = force_ktiled or weight_bytes > (16 << 20)

    resident = dict(pipeline_mode=pl.Buffered(1))  # single-buffer constants

    if not use_ktiled:
        grid = (grid_m,)
        kernel = projection_head_kernel
        in_specs = [
            pl.BlockSpec((block_m, E), lambda i: (i, 0)),            # x tile
            pl.BlockSpec((E, P), lambda i: (0, 0), **resident),      # Wp
            pl.BlockSpec((P, P), lambda i: (0, 0), **resident),      # Wf
            pl.BlockSpec((4, P), lambda i: (0, 0), **resident),      # params
        ]
        out_specs = pl.BlockSpec((block_m, P), lambda i: (i, 0))
        scratch_shapes = []
        dims = ("parallel",)
        est = (E * P * wp_b + P * P * wf_b + 4 * P * p_b
               + 2 * block_m * E * x_b + 2 * block_m * P * o_b
               + 6 * block_m * P * 4)
    else:
        if block_k is None:
            block_k = 512 if E % 512 == 0 else 128
        if E % block_k != 0:
            raise ValueError("K-tiled path needs embedding_dim % block_k == 0")
        grid = (grid_m, E // block_k)
        kernel = projection_head_ktiled_kernel
        in_specs = [
            pl.BlockSpec((block_m, block_k), lambda i, k: (i, k)),   # x tile
            pl.BlockSpec((block_k, P), lambda i, k: (k, 0)),         # Wp tile
            pl.BlockSpec((P, P), lambda i, k: (0, 0), **resident),   # Wf
            pl.BlockSpec((4, P), lambda i, k: (0, 0), **resident),   # params
        ]
        out_specs = pl.BlockSpec((block_m, P), lambda i, k: (i, 0))
        scratch_shapes = [pltpu.VMEM((block_m, P), jnp.float32)]
        dims = ("parallel", "arbitrary")
        est = (2 * block_k * P * wp_b + P * P * wf_b + 4 * P * p_b
               + 2 * block_m * block_k * x_b + 2 * block_m * P * o_b
               + block_m * P * 4 + 6 * block_m * P * 4)

    if vmem_limit_bytes is None:
        # Explicit scoped-VMEM request: footprint + headroom, floored at the
        # default-ish 32 MiB so small problems never regress.
        vmem_limit_bytes = min(max(est + (4 << 20), 32 << 20), 120 << 20)

    return pl.pallas_call(
        kernel,
        out_shape=jax.ShapeDtypeStruct((B, P), x.dtype),
        grid_spec=pltpu.PrefetchScalarGridSpec(
            num_scalar_prefetch=0,
            grid=grid,
            in_specs=in_specs,
            out_specs=out_specs,
            scratch_shapes=scratch_shapes,
        ),
        compiler_params=pltpu.CompilerParams(
            dimension_semantics=dims,
            vmem_limit_bytes=vmem_limit_bytes,
        ),
    )(x, wp, wf, params)


def _reference(x, wp, bp, wf, bf, gamma, beta):
    projected = x @ wp + jnp.reshape(bp, (1, -1))
    h = 0.5 * projected * (1.0 + jax.lax.erf(projected * _INV_SQRT2))
    z = h @ wf + jnp.reshape(bf, (1, -1))
    r = z + projected
    mean = jnp.mean(r, axis=-1, keepdims=True)
    var = jnp.mean((r - mean) ** 2, axis=-1, keepdims=True)
    return ((r - mean) * jax.lax.rsqrt(var + _LN_EPS)
            * jnp.reshape(gamma, (1, -1)) + jnp.reshape(beta, (1, -1)))


if __name__ == "__main__":
    B, EMB, PROJ = 32, 128, 128

    key = jax.random.PRNGKey(0)
    k_x, k_wp, k_bp, k_wf, k_bf, k_x2, k_wp2 = jax.random.split(key, 7)

    x = jax.random.normal(k_x, (B, EMB), dtype=jnp.float32)
    # Synthetic parameters (shapes from the module's __init__), pre-transposed
    # as [in, out]. LayerNorm defaults: weight=1, bias=0.
    wp = jax.random.normal(k_wp, (EMB, PROJ), dtype=jnp.float32) * 0.05
    bp = jax.random.normal(k_bp, (1, PROJ), dtype=jnp.float32) * 0.05
    wf = jax.random.normal(k_wf, (PROJ, PROJ), dtype=jnp.float32) * 0.05
    bf = jax.random.normal(k_bf, (1, PROJ), dtype=jnp.float32) * 0.05
    gamma = jnp.ones((1, PROJ), dtype=jnp.float32)
    beta = jnp.zeros((1, PROJ), dtype=jnp.float32)

    # Weight-resident path: B=32 -> one full-batch block, grid=(1,).
    out = projection_head(x, wp, bp, wf, bf, gamma, beta)
    out = jax.block_until_ready(out)
    ref = _reference(x, wp, bp, wf, bf, gamma, beta)
    assert out.shape == (B, PROJ)
    assert jnp.allclose(out, ref, atol=1e-3, rtol=1e-3), (
        float(jnp.max(jnp.abs(out - ref))))

    # K-tiled fallback path, forced at a small shape (E=256, block_k=128 ->
    # two K steps) to exercise the accumulator init/finalize structure that is
    # used on v7x when Wp exceeds the weight-resident VMEM budget.
    EMB2 = 256
    x2 = jax.random.normal(k_x2, (B, EMB2), dtype=jnp.float32)
    wp2 = jax.random.normal(k_wp2, (EMB2, PROJ), dtype=jnp.float32) * 0.05
    out2 = projection_head(x2, wp2, bp, wf, bf, gamma, beta,
                           force_ktiled=True, block_k=128)
    out2 = jax.block_until_ready(out2)
    ref2 = _reference(x2, wp2, bp, wf, bf, gamma, beta)
    assert out2.shape == (B, PROJ)
    assert jnp.allclose(out2, ref2, atol=1e-3, rtol=1e-3), (
        float(jnp.max(jnp.abs(out2 - ref2))))

    print("KERNEL_OK")
</pallas_src>

<mosaic_0001>
module attributes {stable_mosaic.version = 11 : i64} {
  func.func @projection_head_kernel(%arg0: i32, %arg1: memref<32x128xf32, #tpu.memory_space<vmem>>, %arg2: memref<128x128xf32, #tpu.memory_space<vmem>>, %arg3: memref<128x128xf32, #tpu.memory_space<vmem>>, %arg4: memref<4x128xf32, #tpu.memory_space<vmem>>, %arg5: memref<32x128xf32, #tpu.memory_space<vmem>>) attributes {dimension_semantics = [#tpu.dimension_semantics<parallel>], iteration_bounds = array<i64: 1>, scalar_prefetch = 0 : i64, scratch_operands = 0 : i64, tpu.core_type = #tpu.core_type<tc>, window_params = [{transform_indices = @transform_0, window_bounds = array<i64: 32, 128>}, {pipeline_mode = #tpu.pipeline_mode<synchronous>, transform_indices = @transform_1, window_bounds = array<i64: 128, 128>}, {pipeline_mode = #tpu.pipeline_mode<synchronous>, transform_indices = @transform_2, window_bounds = array<i64: 128, 128>}, {pipeline_mode = #tpu.pipeline_mode<synchronous>, transform_indices = @transform_3, window_bounds = array<i64: 4, 128>}, {transform_indices = @transform_4, window_bounds = array<i64: 32, 128>}]} {
    %c0 = arith.constant 0 : index
    %c0_0 = arith.constant 0 : index
    %0 = vector.load %arg1[%c0, %c0_0] : memref<32x128xf32, #tpu.memory_space<vmem>>, vector<32x128xf32>
    %c0_1 = arith.constant 0 : index
    %c0_2 = arith.constant 0 : index
    %1 = vector.load %arg2[%c0_1, %c0_2] : memref<128x128xf32, #tpu.memory_space<vmem>>, vector<128x128xf32>
    %cst = arith.constant dense<0.000000e+00> : vector<32x128xf32>
    %2 = tpu.matmul %0, %1, %cst {dimension_numbers = #tpu.dot_dimension_numbers<[1], [0], [0], [1], [0, 0, 1, 1], [], []>} : vector<32x128xf32>, vector<128x128xf32>, vector<32x128xf32> -> vector<32x128xf32>
    %c0_3 = arith.constant 0 : index
    %c0_4 = arith.constant 0 : index
    %3 = vector.load %arg4[%c0_3, %c0_4] : memref<4x128xf32, #tpu.memory_space<vmem>>, vector<1x128xf32>
    %4 = vector.broadcast %3 : vector<1x128xf32> to vector<32x128xf32>
    %5 = arith.addf %2, %4 : vector<32x128xf32>
    %c1 = arith.constant 1 : index
    %c0_5 = arith.constant 0 : index
    %6 = vector.load %arg4[%c1, %c0_5] : memref<4x128xf32, #tpu.memory_space<vmem>>, vector<1x128xf32>
    %c2 = arith.constant 2 : index
    %c0_6 = arith.constant 0 : index
    %7 = vector.load %arg4[%c2, %c0_6] : memref<4x128xf32, #tpu.memory_space<vmem>>, vector<1x128xf32>
    %c3 = arith.constant 3 : index
    %c0_7 = arith.constant 0 : index
    %8 = vector.load %arg4[%c3, %c0_7] : memref<4x128xf32, #tpu.memory_space<vmem>>, vector<1x128xf32>
    %cst_8 = arith.constant 5.000000e-01 : f32
    %9 = vector.broadcast %cst_8 : f32 to vector<32x128xf32>
    %10 = arith.mulf %9, %5 : vector<32x128xf32>
    %cst_9 = arith.constant 0.707106769 : f32
    %11 = vector.broadcast %cst_9 : f32 to vector<32x128xf32>
    %12 = arith.mulf %5, %11 : vector<32x128xf32>
    %13 = math.erf %12 : vector<32x128xf32>
    %cst_10 = arith.constant 1.000000e+00 : f32
    %14 = vector.broadcast %cst_10 : f32 to vector<32x128xf32>
    %15 = arith.addf %14, %13 : vector<32x128xf32>
    %16 = arith.mulf %10, %15 : vector<32x128xf32>
    %c0_11 = arith.constant 0 : index
    %c0_12 = arith.constant 0 : index
    %17 = vector.load %arg3[%c0_11, %c0_12] : memref<128x128xf32, #tpu.memory_space<vmem>>, vector<128x128xf32>
    %cst_13 = arith.constant dense<0.000000e+00> : vector<32x128xf32>
    %18 = tpu.matmul %16, %17, %cst_13 {dimension_numbers = #tpu.dot_dimension_numbers<[1], [0], [0], [1], [0, 0, 1, 1], [], []>} : vector<32x128xf32>, vector<128x128xf32>, vector<32x128xf32> -> vector<32x128xf32>
    %19 = vector.broadcast %6 : vector<1x128xf32> to vector<32x128xf32>
    %20 = arith.addf %18, %19 : vector<32x128xf32>
    %21 = arith.addf %20, %5 : vector<32x128xf32>
    %cst_14 = arith.constant 1.000000e+00 : f32
    %cst_15 = arith.constant 1.280000e+02 : f32
    %22 = arith.divf %cst_14, %cst_15 : f32
    %cst_16 = arith.constant dense<0.000000e+00> : vector<32xf32>
    %23 = vector.multi_reduction <add>, %21, %cst_16 [1] : vector<32x128xf32> to vector<32xf32>
    %24 = vector.shape_cast %23 : vector<32xf32> to vector<32x1xf32>
    %25 = arith.mulf %21, %21 : vector<32x128xf32>
    %cst_17 = arith.constant dense<0.000000e+00> : vector<32xf32>
    %26 = vector.multi_reduction <add>, %25, %cst_17 [1] : vector<32x128xf32> to vector<32xf32>
    %27 = vector.shape_cast %26 : vector<32xf32> to vector<32x1xf32>
    %28 = vector.broadcast %22 : f32 to vector<32x1xf32>
    %29 = arith.mulf %24, %28 : vector<32x1xf32>
    %30 = vector.broadcast %22 : f32 to vector<32x1xf32>
    %31 = arith.mulf %27, %30 : vector<32x1xf32>
    %32 = arith.mulf %29, %29 : vector<32x1xf32>
    %33 = arith.subf %31, %32 : vector<32x1xf32>
    %cst_18 = arith.constant 0.000000e+00 : f32
    %34 = vector.broadcast %cst_18 : f32 to vector<32x1xf32>
    %35 = arith.maximumf %33, %34 : vector<32x1xf32>
    %cst_19 = arith.constant 9.99999974E-6 : f32
    %36 = vector.broadcast %cst_19 : f32 to vector<32x1xf32>
    %37 = arith.addf %35, %36 : vector<32x1xf32>
    %38 = math.rsqrt %37 : vector<32x1xf32>
    %39 = vector.broadcast %29 : vector<32x1xf32> to vector<32x128xf32>
    %40 = arith.subf %21, %39 : vector<32x128xf32>
    %41 = vector.broadcast %38 : vector<32x1xf32> to vector<32x128xf32>
    %42 = arith.mulf %40, %41 : vector<32x128xf32>
    %43 = vector.broadcast %7 : vector<1x128xf32> to vector<32x128xf32>
    %44 = arith.mulf %42, %43 : vector<32x128xf32>
    %45 = vector.broadcast %8 : vector<1x128xf32> to vector<32x128xf32>
    %46 = arith.addf %44, %45 : vector<32x128xf32>
    %c0_20 = arith.constant 0 : index
    %c0_21 = arith.constant 0 : index
    %47 = vector.load %arg5[%c0_20, %c0_21] : memref<32x128xf32, #tpu.memory_space<vmem>>, vector<32x128xf32>
    tpu.vector_store %arg5[%c0_20, %c0_21], %46 {strides = array<i32>} : memref<32x128xf32, #tpu.memory_space<vmem>>, vector<32x128xf32>,
    return
  }
  func.func @transform_0(%arg0: i32) -> (i32, i32) {
    %c0_i32 = arith.constant 0 : i32
    %c0_i32_0 = arith.constant 0 : i32
    return %arg0, %c0_i32 : i32, i32
  }
  func.func @transform_1(%arg0: i32) -> (i32, i32) {
    %c0_i32 = arith.constant 0 : i32
    %c0_i32_0 = arith.constant 0 : i32
    %c0_i32_1 = arith.constant 0 : i32
    return %c0_i32, %c0_i32_0 : i32, i32
  }
  func.func @transform_2(%arg0: i32) -> (i32, i32) {
    %c0_i32 = arith.constant 0 : i32
    %c0_i32_0 = arith.constant 0 : i32
    %c0_i32_1 = arith.constant 0 : i32
    return %c0_i32, %c0_i32_0 : i32, i32
  }
  func.func @transform_3(%arg0: i32) -> (i32, i32) {
    %c0_i32 = arith.constant 0 : i32
    %c0_i32_0 = arith.constant 0 : i32
    %c0_i32_1 = arith.constant 0 : i32
    return %c0_i32, %c0_i32_0 : i32, i32
  }
  func.func @transform_4(%arg0: i32) -> (i32, i32) {
    %c0_i32 = arith.constant 0 : i32
    %c0_i32_0 = arith.constant 0 : i32
    return %arg0, %c0_i32 : i32, i32
  }
}

</mosaic_0001>

<llo_original>
// kernel: tpu_custom_call.1
$region0: #{tpu_custom_call.1}
  #allocation0 [shape = 'u32[]', space=smem, size = 0x4, offset = 0x4, fixed_abs, tag = 'smem constant byte address 0x4 - core index']
  #allocation1 [shape = 'u32[144,128]{1,0:T(1,128)}', space=vmem, size = 0x12000, scoped, tag = 'internal scratch']
  %s0 = inlined_call_operand.hbm [shape: f32[32,128], index: 0, kind: input, shape index: {}]
  %s1 = inlined_call_operand.hbm [shape: f32[128,128], index: 1, kind: input, shape index: {}]
  %s2 = inlined_call_operand.hbm [shape: f32[128,128], index: 2, kind: input, shape index: {}]
  %s3 = inlined_call_operand.vmem [shape: f32[4,128], index: 3, kind: input, shape index: {}]
  %s4 = inlined_call_operand.hbm [shape: f32[32,128], index: 4, kind: output, shape index: {}]
  %s5 = sld [smem:[#allocation0]]
  $region38: #{tpu_custom_call.1} parent=0
    _
  %s7 = ssub.s32 1, %s5
  %s8 = scalar_select 0, %s7, %s5
  $region1: #{tpu_custom_call.1} parent=0
    #allocation2 [shape = 'u8[16384]{0}', space=vmem, size = 0x4000, scoped, tag = 'input window, operand 0, single buffered']
    #allocation3 [shape = 's32[1]{0}', space=sflag, size = 0x4, scoped, tag = 'scoped memory for tpu_custom_call.1']
    #allocation4 [shape = 's32[1]{0}', space=sflag, size = 0x4, scoped, tag = 'scoped memory for tpu_custom_call.1']
    #allocation5 [shape = 'u8[65536]{0}', space=vmem, size = 0x10000, scoped, tag = 'input window, operand 1, single buffered']
    #allocation6 [shape = 's32[1]{0}', space=sflag, size = 0x4, scoped, tag = 'scoped memory for tpu_custom_call.1']
    #allocation7 [shape = 'u8[65536]{0}', space=vmem, size = 0x10000, scoped, tag = 'input window, operand 2, single buffered']
    #allocation8 [shape = 'u8[16384]{0}', space=vmem, size = 0x4000, scoped, tag = 'output window, operand 0, single buffered']
    %9 = vsyncpa [#allocation3], 0
    %10 = vsyncpa [#allocation6], 0
    %11 = vsyncpa [#allocation4], 0
    // Predicated region
    $region2: #{tpu_custom_call.1} parent=1 // pred_check
      _
    $region3: #{tpu_custom_call.1} parent=1 // pred_check_branch
      %13 = sbr.rel (0) target = $region5
    $region4: #{tpu_custom_call.1} parent=1 // pred_region
      %s15 = ssub.s32 512, 512
      %16 = vsyncadd [#allocation3], %s15
      %s17 = sshll.u32 [#allocation2], 4
      %s18 = int_to_ptr.vmem [resolvable:$true] %s17
      %23 = dma.hbm_to_vmem [thread:$0]  %s0, 512, %s18, [#allocation3], 128, 128, 8
    $region5: #{tpu_custom_call.1} parent=1 // pred_fallthru
      _
    // Predicated region
    $region6: #{tpu_custom_call.1} parent=1 // pred_check
      _
    $region7: #{tpu_custom_call.1} parent=1 // pred_check_branch
      %25 = sbr.rel (0) target = $region9
    $region8: #{tpu_custom_call.1} parent=1 // pred_region
      %s27 = ssub.s32 2048, 2048
      %28 = vsyncadd [#allocation6], %s27
      %s29 = sshll.u32 [#allocation5], 4
      %s30 = int_to_ptr.vmem [resolvable:$true] %s29
      %35 = dma.hbm_to_vmem [thread:$0]  %s1, 2048, %s30, [#allocation6], 128, 128, 8
    $region9: #{tpu_custom_call.1} parent=1 // pred_fallthru
      _
    // Predicated region
    $region10: #{tpu_custom_call.1} parent=1 // pred_check
      _
    $region11: #{tpu_custom_call.1} parent=1 // pred_check_branch
      %37 = sbr.rel (0) target = $region13
    $region12: #{tpu_custom_call.1} parent=1 // pred_region
      %s39 = ssub.s32 2048, 2048
      %40 = vsyncadd [#allocation6], %s39
      %s41 = sshll.u32 [#allocation7], 4
      %s42 = int_to_ptr.vmem [resolvable:$true] %s41
      %47 = dma.hbm_to_vmem [thread:$0]  %s2, 2048, %s42, [#allocation6], 128, 128, 8
    $region13: #{tpu_custom_call.1} parent=1 // pred_fallthru
      _
    // Predicated region
    $region14: #{tpu_custom_call.1} parent=1 // pred_check
      _
    $region15: #{tpu_custom_call.1} parent=1 // pred_check_branch
      %49 = sbr.rel (0) target = $region17
    $region16: #{tpu_custom_call.1} parent=1 // pred_region
      _
    $region17: #{tpu_custom_call.1} parent=1 // pred_fallthru
      _
    // Predicated region
    $region18: #{tpu_custom_call.1} parent=1 // pred_check
      _
    $region19: #{tpu_custom_call.1} parent=1 // pred_check_branch
      %51 = sbr.rel (0) target = $region21
    $region20: #{tpu_custom_call.1} parent=1 // pred_region
      %52 = dma.done [#allocation3], 512
    $region21: #{tpu_custom_call.1} parent=1 // pred_fallthru
      _
    // Predicated region
    $region22: #{tpu_custom_call.1} parent=1 // pred_check
      _
    $region23: #{tpu_custom_call.1} parent=1 // pred_check_branch
      %54 = sbr.rel (0) target = $region25
    $region24: #{tpu_custom_call.1} parent=1 // pred_region
      %55 = dma.done [#allocation6], 2048
    $region25: #{tpu_custom_call.1} parent=1 // pred_fallthru
      _
    // Predicated region
    $region26: #{tpu_custom_call.1} parent=1 // pred_check
      _
    $region27: #{tpu_custom_call.1} parent=1 // pred_check_branch
      %57 = sbr.rel (0) target = $region29
    $region28: #{tpu_custom_call.1} parent=1 // pred_region
      %58 = dma.done [#allocation6], 2048
    $region29: #{tpu_custom_call.1} parent=1 // pred_fallthru
      _
    %v59 = vld [vmem:[#allocation2] sm:$0xff]
    %v60 = vld [vmem:[#allocation2 + $0x8] sm:$0xff]
    %v61 = vld [vmem:[#allocation2 + $0x10] sm:$0xff]
    %v62 = vld [vmem:[#allocation2 + $0x18] sm:$0xff]
    %v63 = vld [vmem:[#allocation5] sm:$0xff]
    %v64 = vld [vmem:[#allocation5 + $0x8] sm:$0xff]
    %v65 = vld [vmem:[#allocation5 + $0x10] sm:$0xff]
    %v66 = vld [vmem:[#allocation5 + $0x18] sm:$0xff]
    %v67 = vld [vmem:[#allocation5 + $0x20] sm:$0xff]
    %v68 = vld [vmem:[#allocation5 + $0x28] sm:$0xff]
    %v69 = vld [vmem:[#allocation5 + $0x30] sm:$0xff]
    %v70 = vld [vmem:[#allocation5 + $0x38] sm:$0xff]
    %v71 = vld [vmem:[#allocation5 + $0x40] sm:$0xff]
    %v72 = vld [vmem:[#allocation5 + $0x48] sm:$0xff]
    %v73 = vld [vmem:[#allocation5 + $0x50] sm:$0xff]
    %v74 = vld [vmem:[#allocation5 + $0x58] sm:$0xff]
    %v75 = vld [vmem:[#allocation5 + $0x60] sm:$0xff]
    %v76 = vld [vmem:[#allocation5 + $0x68] sm:$0xff]
    %v77 = vld [vmem:[#allocation5 + $0x70] sm:$0xff]
    %v78 = vld [vmem:[#allocation5 + $0x78] sm:$0xff]
    %v79 = vld [vmem:[%s3] sm:$0x1]
    %v80 = vlaneseq
    %v81 = vshrl.u32 %v80, 7
    %v82 = vsub.s32 0, %v81
    %v83 = vrot.slane %v79, %v82
    %84 = vmatprep.subr.mxu0 0.0
    %85 = vmatpush1.msra.mxu0 %v63
    %86 = vmatprep.subr.mxu0 0.0
    %87 = vmatpush1.msra.mxu0 %v64
    %88 = vmatprep.subr.mxu0 0.0
    %89 = vmatpush1.msra.mxu0 %v65
    %90 = vmatprep.subr.mxu0 0.0
    %91 = vmatpush1.msra.mxu0 %v66
    %92 = vmatprep.subr.mxu0 0.0
    %93 = vmatpush1.msra.mxu0 %v67
    %94 = vmatprep.subr.mxu0 0.0
    %95 = vmatpush1.msra.mxu0 %v68
    %96 = vmatprep.subr.mxu0 0.0
    %97 = vmatpush1.msra.mxu0 %v69
    %98 = vmatprep.subr.mxu0 0.0
    %99 = vmatpush1.msra.mxu0 %v70
    %100 = vmatprep.subr.mxu0 0.0
    %101 = vmatpush1.msra.mxu0 %v71
    %102 = vmatprep.subr.mxu0 0.0
    %103 = vmatpush1.msra.mxu0 %v72
    %104 = vmatprep.subr.mxu0 0.0
    %105 = vmatpush1.msra.mxu0 %v73
    %106 = vmatprep.subr.mxu0 0.0
    %107 = vmatpush1.msra.mxu0 %v74
    %108 = vmatprep.subr.mxu0 0.0
    %109 = vmatpush1.msra.mxu0 %v75
    %110 = vmatprep.subr.mxu0 0.0
    %111 = vmatpush1.msra.mxu0 %v76
    %112 = vmatprep.subr.mxu0 0.0
    %113 = vmatpush1.msra.mxu0 %v77
    %114 = vmatprep.subr.mxu0 0.0
    %115 = vmatpush1.msra.mxu0 %v78
    %116 = vmatprep.subr.mxu0 0.0
    %117 = vmatpush1.msra.mxu0 0.0
    %118 = vmatprep.subr.mxu0 0.0
    %119 = vmatpush1.msra.mxu0 0.0
    %120 = vmatprep.subr.mxu0 0.0
    %121 = vmatpush1.msra.mxu0 0.0
    %122 = vmatprep.subr.mxu0 0.0
    %123 = vmatpush1.msra.mxu0 0.0
    %124 = vmatprep.subr.mxu0 0.0
    %125 = vmatpush1.msra.mxu0 0.0
    %126 = vmatprep.subr.mxu0 0.0
    %127 = vmatpush1.msra.mxu0 0.0
    %128 = vmatprep.subr.mxu0 0.0
    %129 = vmatpush1.msra.mxu0 0.0
    %130 = vmatprep.subr.mxu0 0.0
    %131 = vmatpush1.msra.mxu0 0.0
    %132 = vmatprep.subr.mxu0 0.0
    %133 = vmatpush1.msra.mxu0 0.0
    %134 = vmatprep.subr.mxu0 0.0
    %135 = vmatpush1.msra.mxu0 0.0
    %136 = vmatprep.subr.mxu0 0.0
    %137 = vmatpush1.msra.mxu0 0.0
    %138 = vmatprep.subr.mxu0 0.0
    %139 = vmatpush1.msra.mxu0 0.0
    %140 = vmatprep.subr.mxu0 0.0
    %141 = vmatpush1.msra.mxu0 0.0
    %142 = vmatprep.subr.mxu0 0.0
    %143 = vmatpush1.msra.mxu0 0.0
    %144 = vmatprep.subr.mxu0 0.0
    %145 = vmatpush1.msra.mxu0 0.0
    %146 = vmatprep.subr.mxu0 0.0
    %147 = vmatpush1.msra.mxu0 0.0
    %148 = vmatprep.mubr.f32.mxu0 0.0
    %149 = vmatmul.mubr.f32.gmra.mrb[0].mxu0 %v59
    %v150 = vpop.f32.mrb[0].mxu0
    %v151 = vadd.f32 %v83, %v150
    %v152 = vpop.f32.mrb[0].mxu0
    %153 = vmatprep.mubr.f32.mxu0 0.0
    %154 = vmatmul.mubr.f32.gmra.mrb[0].mxu0 %v60
    %v155 = vpop.f32.mrb[0].mxu0
    %v156 = vadd.f32 %v83, %v155
    %v157 = vpop.f32.mrb[0].mxu0
    %158 = vmatprep.mubr.f32.mxu0 0.0
    %159 = vmatmul.mubr.f32.gmra.mrb[0].mxu0 %v61
    %v160 = vpop.f32.mrb[0].mxu0
    %v161 = vadd.f32 %v83, %v160
    %v162 = vpop.f32.mrb[0].mxu0
    %163 = vmatprep.mubr.f32.mxu0 0.0
    %164 = vmatmul.mubr.f32.gmra.mrb[0].mxu0 %v62
    %v165 = vpop.f32.mrb[0].mxu0
    %v166 = vadd.f32 %v83, %v165
    %v167 = vpop.f32.mrb[0].mxu0
    %168 = vdwg.mxu0
    %v169 = vld [vmem:[%s3 + $0x1] sm:$0x1]
    %v170 = vld [vmem:[%s3 + $0x2] sm:$0x1]
    %v171 = vld [vmem:[%s3 + $0x3] sm:$0x1]
    %v172 = vmul.f32 %v151, 0.5
    %v173 = vmul.f32 %v156, 0.5
    %v174 = vmul.f32 %v161, 0.5
    %v175 = vmul.f32 %v166, 0.5
    %v176 = vmul.f32 %v151, 0.70710677
    %v177 = vmul.f32 %v156, 0.70710677
    %v178 = vmul.f32 %v161, 0.70710677
    %v179 = vmul.f32 %v166, 0.70710677
    %v180 = verf.f32.pop %v176
    %v181 = verf.f32.pop %v177
    %v182 = verf.f32.pop %v178
    %v183 = verf.f32.pop %v179
    %v184 = vadd.f32 %v180, 1.0
    %v185 = vadd.f32 %v181, 1.0
    %v186 = vadd.f32 %v182, 1.0
    %v187 = vadd.f32 %v183, 1.0
    %v188 = vmul.f32 %v172, %v184
    %v189 = vmul.f32 %v173, %v185
    %v190 = vmul.f32 %v174, %v186
    %v191 = vmul.f32 %v175, %v187
    %v192 = vld [vmem:[#allocation7] sm:$0xff]
    %v193 = vld [vmem:[#allocation7 + $0x8] sm:$0xff]
    %v194 = vld [vmem:[#allocation7 + $0x10] sm:$0xff]
    %v195 = vld [vmem:[#allocation7 + $0x18] sm:$0xff]
    %v196 = vld [vmem:[#allocation7 + $0x20] sm:$0xff]
    %v197 = vld [vmem:[#allocation7 + $0x28] sm:$0xff]
    %v198 = vld [vmem:[#allocation7 + $0x30] sm:$0xff]
    %v199 = vld [vmem:[#allocation7 + $0x38] sm:$0xff]
    %v200 = vld [vmem:[#allocation7 + $0x40] sm:$0xff]
    %v201 = vld [vmem:[#allocation7 + $0x48] sm:$0xff]
    %v202 = vld [vmem:[#allocation7 + $0x50] sm:$0xff]
    %v203 = vld [vmem:[#allocation7 + $0x58] sm:$0xff]
    %v204 = vld [vmem:[#allocation7 + $0x60] sm:$0xff]
    %v205 = vld [vmem:[#allocation7 + $0x68] sm:$0xff]
    %v206 = vld [vmem:[#allocation7 + $0x70] sm:$0xff]
    %v207 = vld [vmem:[#allocation7 + $0x78] sm:$0xff]
    %v208 = vlaneseq
    %v209 = vshrl.u32 %v208, 7
    %v210 = vsub.s32 0, %v209
    %v211 = vrot.slane %v169, %v210
    %212 = vmatprep.subr.mxu0 0.0
    %213 = vmatpush1.msra.mxu0 %v192
    %214 = vmatprep.subr.mxu0 0.0
    %215 = vmatpush1.msra.mxu0 %v193
    %216 = vmatprep.subr.mxu0 0.0
    %217 = vmatpush1.msra.mxu0 %v194
    %218 = vmatprep.subr.mxu0 0.0
    %219 = vmatpush1.msra.mxu0 %v195
    %220 = vmatprep.subr.mxu0 0.0
    %221 = vmatpush1.msra.mxu0 %v196
    %222 = vmatprep.subr.mxu0 0.0
    %223 = vmatpush1.msra.mxu0 %v197
    %224 = vmatprep.subr.mxu0 0.0
    %225 = vmatpush1.msra.mxu0 %v198
    %226 = vmatprep.subr.mxu0 0.0
    %227 = vmatpush1.msra.mxu0 %v199
    %228 = vmatprep.subr.mxu0 0.0
    %229 = vmatpush1.msra.mxu0 %v200
    %230 = vmatprep.subr.mxu0 0.0
    %231 = vmatpush1.msra.mxu0 %v201
    %232 = vmatprep.subr.mxu0 0.0
    %233 = vmatpush1.msra.mxu0 %v202
    %234 = vmatprep.subr.mxu0 0.0
    %235 = vmatpush1.msra.mxu0 %v203
    %236 = vmatprep.subr.mxu0 0.0
    %237 = vmatpush1.msra.mxu0 %v204
    %238 = vmatprep.subr.mxu0 0.0
    %239 = vmatpush1.msra.mxu0 %v205
    %240 = vmatprep.subr.mxu0 0.0
    %241 = vmatpush1.msra.mxu0 %v206
    %242 = vmatprep.subr.mxu0 0.0
    %243 = vmatpush1.msra.mxu0 %v207
    %244 = vmatprep.subr.mxu0 0.0
    %245 = vmatpush1.msra.mxu0 0.0
    %246 = vmatprep.subr.mxu0 0.0
    %247 = vmatpush1.msra.mxu0 0.0
    %248 = vmatprep.subr.mxu0 0.0
    %249 = vmatpush1.msra.mxu0 0.0
    %250 = vmatprep.subr.mxu0 0.0
    %251 = vmatpush1.msra.mxu0 0.0
    %252 = vmatprep.subr.mxu0 0.0
    %253 = vmatpush1.msra.mxu0 0.0
    %254 = vmatprep.subr.mxu0 0.0
    %255 = vmatpush1.msra.mxu0 0.0
    %256 = vmatprep.subr.mxu0 0.0
    %257 = vmatpush1.msra.mxu0 0.0
    %258 = vmatprep.subr.mxu0 0.0
    %259 = vmatpush1.msra.mxu0 0.0
    %260 = vmatprep.subr.mxu0 0.0
    %261 = vmatpush1.msra.mxu0 0.0
    %262 = vmatprep.subr.mxu0 0.0
    %263 = vmatpush1.msra.mxu0 0.0
    %264 = vmatprep.subr.mxu0 0.0
    %265 = vmatpush1.msra.mxu0 0.0
    %266 = vmatprep.subr.mxu0 0.0
    %267 = vmatpush1.msra.mxu0 0.0
    %268 = vmatprep.subr.mxu0 0.0
    %269 = vmatpush1.msra.mxu0 0.0
    %270 = vmatprep.subr.mxu0 0.0
    %271 = vmatpush1.msra.mxu0 0.0
    %272 = vmatprep.subr.mxu0 0.0
    %273 = vmatpush1.msra.mxu0 0.0
    %274 = vmatprep.subr.mxu0 0.0
    %275 = vmatpush1.msra.mxu0 0.0
    %276 = vmatprep.mubr.f32.mxu0 0.0
    %277 = vmatmul.mubr.f32.gmra.mrb[0].mxu0 %v188
    %v278 = vpop.f32.mrb[0].mxu0
    %v279 = vadd.f32 %v211, %v278
    %v280 = vpop.f32.mrb[0].mxu0
    %281 = vmatprep.mubr.f32.mxu0 0.0
    %282 = vmatmul.mubr.f32.gmra.mrb[0].mxu0 %v189
    %v283 = vpop.f32.mrb[0].mxu0
    %v284 = vadd.f32 %v211, %v283
    %v285 = vpop.f32.mrb[0].mxu0
    %286 = vmatprep.mubr.f32.mxu0 0.0
    %287 = vmatmul.mubr.f32.gmra.mrb[0].mxu0 %v190
    %v288 = vpop.f32.mrb[0].mxu0
    %v289 = vadd.f32 %v211, %v288
    %v290 = vpop.f32.mrb[0].mxu0
    %291 = vmatprep.mubr.f32.mxu0 0.0
    %292 = vmatmul.mubr.f32.gmra.mrb[0].mxu0 %v191
    %v293 = vpop.f32.mrb[0].mxu0
    %v294 = vadd.f32 %v211, %v293
    %v295 = vpop.f32.mrb[0].mxu0
    %296 = vdwg.mxu0
    %v297 = vadd.f32 %v279, %v151
    %v298 = vadd.f32 %v284, %v156
    %v299 = vadd.f32 %v289, %v161
    %v300 = vadd.f32 %v294, %v166
    %301 = vadd.xlane.f32.xlu0 %v297
    %v302 = vpop.xlane.xlu0 %301
    %303 = vadd.xlane.f32.xlu0 %v298
    %v304 = vpop.xlane.xlu0 %303
    %305 = vadd.xlane.f32.xlu0 %v299
    %v306 = vpop.xlane.xlu0 %305
    %307 = vadd.xlane.f32.xlu0 %v300
    %v308 = vpop.xlane.xlu0 %307
    %v309 = vmul.f32 %v297, %v297
    %v310 = vmul.f32 %v298, %v298
    %v311 = vmul.f32 %v299, %v299
    %v312 = vmul.f32 %v300, %v300
    %313 = vadd.xlane.f32.xlu0 %v309
    %v314 = vpop.xlane.xlu0 %313
    %315 = vadd.xlane.f32.xlu0 %v310
    %v316 = vpop.xlane.xlu0 %315
    %317 = vadd.xlane.f32.xlu0 %v311
    %v318 = vpop.xlane.xlu0 %317
    %319 = vadd.xlane.f32.xlu0 %v312
    %v320 = vpop.xlane.xlu0 %319
    %v321 = vmul.f32 %v302, 0.0078125
    %v322 = vmul.f32 %v304, 0.0078125
    %v323 = vmul.f32 %v306, 0.0078125
    %v324 = vmul.f32 %v308, 0.0078125
    %v325 = vmul.f32 %v314, 0.0078125
    %v326 = vmul.f32 %v316, 0.0078125
    %v327 = vmul.f32 %v318, 0.0078125
    %v328 = vmul.f32 %v320, 0.0078125
    %v329 = vmul.f32 %v321, %v321
    %v330 = vmul.f32 %v322, %v322
    %v331 = vmul.f32 %v323, %v323
    %v332 = vmul.f32 %v324, %v324
    %v333 = vsub.f32 %v325, %v329
    %v334 = vsub.f32 %v326, %v330
    %v335 = vsub.f32 %v327, %v331
    %v336 = vsub.f32 %v328, %v332
    %v337 = vmax.f32 %v333, 0.0
    %v338 = vmax.f32 %v334, 0.0
    %v339 = vmax.f32 %v335, 0.0
    %v340 = vmax.f32 %v336, 0.0
    %v341 = vadd.f32 %v337, 1e-05
    %v342 = vadd.f32 %v338, 1e-05
    %v343 = vadd.f32 %v339, 1e-05
    %v344 = vadd.f32 %v340, 1e-05
    %v345 = vrsqrt.pop %v341
    %v346 = vrsqrt.pop %v342
    %v347 = vrsqrt.pop %v343
    %v348 = vrsqrt.pop %v344
    %v349 = vsub.f32 %v297, %v321
    %v350 = vsub.f32 %v298, %v322
    %v351 = vsub.f32 %v299, %v323
    %v352 = vsub.f32 %v300, %v324
    %v353 = vmul.f32 %v349, %v345
    %v354 = vmul.f32 %v350, %v346
    %v355 = vmul.f32 %v351, %v347
    %v356 = vmul.f32 %v352, %v348
    %v357 = vlaneseq
    %v358 = vshrl.u32 %v357, 7
    %v359 = vsub.s32 0, %v358
    %v360 = vrot.slane %v170, %v359
    %v361 = vmul.f32 %v353, %v360
    %v362 = vmul.f32 %v354, %v360
    %v363 = vmul.f32 %v355, %v360
    %v364 = vmul.f32 %v356, %v360
    %v365 = vlaneseq
    %v366 = vshrl.u32 %v365, 7
    %v367 = vsub.s32 0, %v366
    %v368 = vrot.slane %v171, %v367
    %v369 = vadd.f32 %v361, %v368
    %v370 = vadd.f32 %v362, %v368
    %v371 = vadd.f32 %v363, %v368
    %v372 = vadd.f32 %v364, %v368
    %373 = vst [vmem:[#allocation8] sm:$0xff] %v369
    %374 = vst [vmem:[#allocation8 + $0x8] sm:$0xff] %v370
    %375 = vst [vmem:[#allocation8 + $0x10] sm:$0xff] %v371
    %376 = vst [vmem:[#allocation8 + $0x18] sm:$0xff] %v372
    // Predicated region
    $region30: #{tpu_custom_call.1} parent=1 // pred_check
      _
    $region31: #{tpu_custom_call.1} parent=1 // pred_check_branch
      %378 = sbr.rel (0) target = $region33
    $region32: #{tpu_custom_call.1} parent=1 // pred_region
      %s380 = ssub.s32 512, 512
      %381 = vsyncadd [#allocation4], %s380
      %s382 = sshll.u32 [#allocation8], 4
      %s383 = int_to_ptr.vmem [resolvable:$true] %s382
      %388 = dma.vmem_to_hbm [thread:$0]  %s383, 512, %s4, [#allocation4], 128, 128, 8
    $region33: #{tpu_custom_call.1} parent=1 // pred_fallthru
      _
    // Predicated region
    $region34: #{tpu_custom_call.1} parent=1 // pred_check
      _
    $region35: #{tpu_custom_call.1} parent=1 // pred_check_branch
      %390 = sbr.rel (0) target = $region37
    $region36: #{tpu_custom_call.1} parent=1 // pred_region
      %391 = dma.done [#allocation4], 512
    $region37: #{tpu_custom_call.1} parent=1 // pred_fallthru
      _
    %392 = vsyncpa [#allocation3], 1
    %393 = vsyncpa [#allocation6], 1
    %394 = vsyncpa [#allocation4], 1

</llo_original>
